<compile_context>
chip_gen: v5e
topology: v5e:2x2
jax: 0.10.0
libtpu: 0.0.40
codegen_flags: <defaults>
</compile_context>

<pallas_src>
import functools

import jax
import jax.numpy as jnp
from jax.experimental import pallas as pl
from jax.experimental.pallas import tpu as pltpu

NUM_OFFSETS = 17
RADIUS = NUM_OFFSETS // 2  # 8


def _scatter_diag1_kernel(xp_ref, w_ref, bp_ref, o_ref, src_ref, *,
                          starts, cin, length):
    # xp_ref : (1, Cin, Lext)   zero-padded, spatially-flattened input (one batch)
    # w_ref  : (Cout, 17*Cin)   weights with the offset index folded into K
    # bp_ref : (Cout, L)        precomputed border-masked bias plane, L = H*Wp
    # o_ref  : (1, Cout, L)
    # src_ref: (17*Cin, L)      VMEM scratch holding the 17 shifted sources
    for k, s in enumerate(starts):          # static unroll; each shift is one lane slice
        src_ref[k * cin:(k + 1) * cin, :] = xp_ref[0, :, s:s + length]
    acc = jnp.dot(w_ref[...], src_ref[...],
                  preferred_element_type=jnp.float32)       # (Cout, L), one MXU pass
    o_ref[0] = (acc + bp_ref[...]).astype(o_ref.dtype)


def scatter_diagonal1(inputs, weights, bias):
    """inputs: tuple of NCHW arrays (this op uses the first/only one)."""
    # TODO(synk): multi-input behavior of the proprietary op is unknown;
    # the module is exercised here with a single input tensor.
    x = inputs[0].astype(jnp.float32)                        # (B, Cin, H, W) NCHW
    B, Cin, H, W = x.shape
    Cout = weights.shape[1]
    Hp, Wp = H + 2 * RADIUS, W + 2 * RADIUS
    L = H * Wp                                               # output flat grid (rows x padded cols)

    # Zero-pad spatially, flatten the padded spatial axis, and extend it so that
    # every diagonal shift d becomes a contiguous lane slice of length L.
    xp = jnp.pad(x, ((0, 0), (0, 0), (RADIUS, RADIUS), (RADIUS, RADIUS)))
    xp_flat = xp.reshape(B, Cin, Hp * Wp)
    lext_raw = Hp * Wp + 2 * RADIUS
    lext = ((lext_raw + 127) // 128) * 128                   # lane-aligned extension
    xp_ext = jnp.pad(xp_flat, ((0, 0), (0, 0),
                               (RADIUS, lext - Hp * Wp - RADIUS)))

    # For output flat index q = y*Wp + (x+RADIUS), the source for offset d sits at
    # flat index q + (RADIUS-d)*Wp - d (plus the left extension of RADIUS).
    starts = tuple(RADIUS + (RADIUS - (k - RADIUS)) * Wp - (k - RADIUS)
                   for k in range(NUM_OFFSETS))

    # Weights folded so a single dot contracts over all 17 offsets: (Cout, 17*Cin),
    # row order k*Cin + i to match the scratch layout.
    w_cat = jnp.transpose(weights.astype(jnp.float32), (1, 0, 2)).reshape(
        Cout, NUM_OFFSETS * Cin)

    # Precomputed border-masked bias plane on the (H, Wp) output grid (padded
    # columns get 0 and are discarded after the kernel).
    ys = jnp.arange(H)[:, None, None]
    xs = (jnp.arange(Wp) - RADIUS)[None, :, None]
    ds = (jnp.arange(NUM_OFFSETS) - RADIUS)[None, None, :]
    valid = ((ys - ds >= 0) & (ys - ds < H) &
             (xs - ds >= 0) & (xs - ds < W) &
             (xs >= 0) & (xs < W))
    bplane = jnp.einsum('hwk,ko->ohw', valid.astype(jnp.float32),
                        bias.astype(jnp.float32)).reshape(Cout, L)

    kernel = functools.partial(_scatter_diag1_kernel,
                               starts=starts, cin=Cin, length=L)

    out_flat = pl.pallas_call(
        kernel,
        out_shape=jax.ShapeDtypeStruct((B, Cout, L), jnp.float32),
        grid_spec=pltpu.PrefetchScalarGridSpec(
            num_scalar_prefetch=0,
            grid=(B,),
            in_specs=[
                pl.BlockSpec((1, Cin, lext), lambda b: (b, 0, 0)),
                pl.BlockSpec((Cout, NUM_OFFSETS * Cin), lambda b: (0, 0)),
                pl.BlockSpec((Cout, L), lambda b: (0, 0)),
            ],
            out_specs=pl.BlockSpec((1, Cout, L), lambda b: (b, 0, 0)),
            scratch_shapes=[pltpu.VMEM((NUM_OFFSETS * Cin, L), jnp.float32)],
        ),
        compiler_params=pltpu.CompilerParams(
            dimension_semantics=("parallel",)),
    )(xp_ext, w_cat, bplane)

    # (B, Cout, H, Wp) -> drop the padded columns -> NCHW. Reshape is metadata-only;
    # the column slice is a tiny XLA op on the (small) output.
    return out_flat.reshape(B, Cout, H, Wp)[:, :, :, RADIUS:RADIUS + W]


def scatter_diagonal1_ref(inputs, weights, bias):
    """Pure-JAX reference of the same semantics."""
    x_nchw = inputs[0]
    B, Cin, H, W = x_nchw.shape
    x = jnp.transpose(x_nchw, (0, 2, 3, 1)).astype(jnp.float32)
    xp = jnp.pad(x, ((0, 0), (RADIUS, RADIUS), (RADIUS, RADIUS), (0, 0)))
    yi = jnp.arange(H)[:, None]
    xi = jnp.arange(W)[None, :]
    out = jnp.zeros((B, H, W, weights.shape[1]), jnp.float32)
    for k in range(NUM_OFFSETS):
        d = k - RADIUS
        src = xp[:, RADIUS - d:RADIUS - d + H, RADIUS - d:RADIUS - d + W, :]
        contrib = jnp.einsum('bhwi,oi->bhwo', src, weights[k].astype(jnp.float32))
        valid = ((yi - d >= 0) & (yi - d < H) & (xi - d >= 0) & (xi - d < W))
        out = out + contrib + jnp.where(valid[None, :, :, None],
                                        bias[k].astype(jnp.float32)[None, None, None, :],
                                        0.0)
    return jnp.transpose(out, (0, 3, 1, 2))


if __name__ == "__main__":
    # Small shapes consistent with the module: batch=2, in_ch=4, out_ch=8, 16x16.
    B, Cin, Cout, H, W = 2, 4, 8, 16, 16
    key = jax.random.PRNGKey(0)
    kx, kw, kb = jax.random.split(key, 3)

    x = jax.random.normal(kx, (B, Cin, H, W), dtype=jnp.float32)
    weights = jax.random.normal(kw, (NUM_OFFSETS, Cout, Cin), dtype=jnp.float32)
    bias = jax.random.normal(kb, (NUM_OFFSETS, Cout), dtype=jnp.float32)

    out = scatter_diagonal1((x,), weights, bias)
    out = jax.block_until_ready(out)

    ref = scatter_diagonal1_ref((x,), weights, bias)
    assert out.shape == (B, Cout, H, W)
    assert jnp.allclose(out, ref, atol=1e-4, rtol=1e-4), "mismatch vs reference"

    print("KERNEL_OK")
</pallas_src>

<mosaic_0001>
module attributes {stable_mosaic.version = 11 : i64} {
  func.func @_scatter_diag1_kernel(%arg0: i32, %arg1: memref<1x4x1152xf32, #tpu.memory_space<vmem>>, %arg2: memref<8x68xf32, #tpu.memory_space<vmem>>, %arg3: memref<8x512xf32, #tpu.memory_space<vmem>>, %arg4: memref<1x8x512xf32, #tpu.memory_space<vmem>>, %arg5: memref<68x512xf32, #tpu.memory_space<vmem>>) attributes {dimension_semantics = [#tpu.dimension_semantics<parallel>], iteration_bounds = array<i64: 2>, scalar_prefetch = 0 : i64, scratch_operands = 1 : i64, tpu.core_type = #tpu.core_type<tc>, window_params = [{transform_indices = @transform_0, window_bounds = array<i64: 1, 4, 1152>}, {pipeline_mode = #tpu.pipeline_mode<synchronous>, transform_indices = @transform_1, window_bounds = array<i64: 8, 68>}, {pipeline_mode = #tpu.pipeline_mode<synchronous>, transform_indices = @transform_2, window_bounds = array<i64: 8, 512>}, {transform_indices = @transform_3, window_bounds = array<i64: 1, 8, 512>}]} {
    %c0 = arith.constant 0 : index
    %c0_0 = arith.constant 0 : index
    %c528 = arith.constant 528 : index
    %0 = vector.load %arg1[%c0, %c0_0, %c528] : memref<1x4x1152xf32, #tpu.memory_space<vmem>>, vector<1x4x512xf32>
    %1 = vector.shape_cast %0 : vector<1x4x512xf32> to vector<4x512xf32>
    %c0_1 = arith.constant 0 : index
    %c0_2 = arith.constant 0 : index
    %2 = vector.load %arg5[%c0_1, %c0_2] : memref<68x512xf32, #tpu.memory_space<vmem>>, vector<4x512xf32>
    tpu.vector_store %arg5[%c0_1, %c0_2], %1 {strides = array<i32>} : memref<68x512xf32, #tpu.memory_space<vmem>>, vector<4x512xf32>,
    %c0_3 = arith.constant 0 : index
    %c0_4 = arith.constant 0 : index
    %c495 = arith.constant 495 : index
    %3 = vector.load %arg1[%c0_3, %c0_4, %c495] : memref<1x4x1152xf32, #tpu.memory_space<vmem>>, vector<1x4x512xf32>
    %4 = vector.shape_cast %3 : vector<1x4x512xf32> to vector<4x512xf32>
    %c4 = arith.constant 4 : index
    %c0_5 = arith.constant 0 : index
    %5 = vector.load %arg5[%c4, %c0_5] : memref<68x512xf32, #tpu.memory_space<vmem>>, vector<4x512xf32>
    tpu.vector_store %arg5[%c4, %c0_5], %4 {strides = array<i32>} : memref<68x512xf32, #tpu.memory_space<vmem>>, vector<4x512xf32>,
    %c0_6 = arith.constant 0 : index
    %c0_7 = arith.constant 0 : index
    %c462 = arith.constant 462 : index
    %6 = vector.load %arg1[%c0_6, %c0_7, %c462] : memref<1x4x1152xf32, #tpu.memory_space<vmem>>, vector<1x4x512xf32>
    %7 = vector.shape_cast %6 : vector<1x4x512xf32> to vector<4x512xf32>
    %c8 = arith.constant 8 : index
    %c0_8 = arith.constant 0 : index
    %8 = vector.load %arg5[%c8, %c0_8] : memref<68x512xf32, #tpu.memory_space<vmem>>, vector<4x512xf32>
    tpu.vector_store %arg5[%c8, %c0_8], %7 {strides = array<i32>} : memref<68x512xf32, #tpu.memory_space<vmem>>, vector<4x512xf32>,
    %c0_9 = arith.constant 0 : index
    %c0_10 = arith.constant 0 : index
    %c429 = arith.constant 429 : index
    %9 = vector.load %arg1[%c0_9, %c0_10, %c429] : memref<1x4x1152xf32, #tpu.memory_space<vmem>>, vector<1x4x512xf32>
    %10 = vector.shape_cast %9 : vector<1x4x512xf32> to vector<4x512xf32>
    %c12 = arith.constant 12 : index
    %c0_11 = arith.constant 0 : index
    %11 = vector.load %arg5[%c12, %c0_11] : memref<68x512xf32, #tpu.memory_space<vmem>>, vector<4x512xf32>
    tpu.vector_store %arg5[%c12, %c0_11], %10 {strides = array<i32>} : memref<68x512xf32, #tpu.memory_space<vmem>>, vector<4x512xf32>,
    %c0_12 = arith.constant 0 : index
    %c0_13 = arith.constant 0 : index
    %c396 = arith.constant 396 : index
    %12 = vector.load %arg1[%c0_12, %c0_13, %c396] : memref<1x4x1152xf32, #tpu.memory_space<vmem>>, vector<1x4x512xf32>
    %13 = vector.shape_cast %12 : vector<1x4x512xf32> to vector<4x512xf32>
    %c16 = arith.constant 16 : index
    %c0_14 = arith.constant 0 : index
    %14 = vector.load %arg5[%c16, %c0_14] : memref<68x512xf32, #tpu.memory_space<vmem>>, vector<4x512xf32>
    tpu.vector_store %arg5[%c16, %c0_14], %13 {strides = array<i32>} : memref<68x512xf32, #tpu.memory_space<vmem>>, vector<4x512xf32>,
    %c0_15 = arith.constant 0 : index
    %c0_16 = arith.constant 0 : index
    %c363 = arith.constant 363 : index
    %15 = vector.load %arg1[%c0_15, %c0_16, %c363] : memref<1x4x1152xf32, #tpu.memory_space<vmem>>, vector<1x4x512xf32>
    %16 = vector.shape_cast %15 : vector<1x4x512xf32> to vector<4x512xf32>
    %c20 = arith.constant 20 : index
    %c0_17 = arith.constant 0 : index
    %17 = vector.load %arg5[%c20, %c0_17] : memref<68x512xf32, #tpu.memory_space<vmem>>, vector<4x512xf32>
    tpu.vector_store %arg5[%c20, %c0_17], %16 {strides = array<i32>} : memref<68x512xf32, #tpu.memory_space<vmem>>, vector<4x512xf32>,
    %c0_18 = arith.constant 0 : index
    %c0_19 = arith.constant 0 : index
    %c330 = arith.constant 330 : index
    %18 = vector.load %arg1[%c0_18, %c0_19, %c330] : memref<1x4x1152xf32, #tpu.memory_space<vmem>>, vector<1x4x512xf32>
    %19 = vector.shape_cast %18 : vector<1x4x512xf32> to vector<4x512xf32>
    %c24 = arith.constant 24 : index
    %c0_20 = arith.constant 0 : index
    %20 = vector.load %arg5[%c24, %c0_20] : memref<68x512xf32, #tpu.memory_space<vmem>>, vector<4x512xf32>
    tpu.vector_store %arg5[%c24, %c0_20], %19 {strides = array<i32>} : memref<68x512xf32, #tpu.memory_space<vmem>>, vector<4x512xf32>,
    %c0_21 = arith.constant 0 : index
    %c0_22 = arith.constant 0 : index
    %c297 = arith.constant 297 : index
    %21 = vector.load %arg1[%c0_21, %c0_22, %c297] : memref<1x4x1152xf32, #tpu.memory_space<vmem>>, vector<1x4x512xf32>
    %22 = vector.shape_cast %21 : vector<1x4x512xf32> to vector<4x512xf32>
    %c28 = arith.constant 28 : index
    %c0_23 = arith.constant 0 : index
    %23 = vector.load %arg5[%c28, %c0_23] : memref<68x512xf32, #tpu.memory_space<vmem>>, vector<4x512xf32>
    tpu.vector_store %arg5[%c28, %c0_23], %22 {strides = array<i32>} : memref<68x512xf32, #tpu.memory_space<vmem>>, vector<4x512xf32>,
    %c0_24 = arith.constant 0 : index
    %c0_25 = arith.constant 0 : index
    %c264 = arith.constant 264 : index
    %24 = vector.load %arg1[%c0_24, %c0_25, %c264] : memref<1x4x1152xf32, #tpu.memory_space<vmem>>, vector<1x4x512xf32>
    %25 = vector.shape_cast %24 : vector<1x4x512xf32> to vector<4x512xf32>
    %c32 = arith.constant 32 : index
    %c0_26 = arith.constant 0 : index
    %26 = vector.load %arg5[%c32, %c0_26] : memref<68x512xf32, #tpu.memory_space<vmem>>, vector<4x512xf32>
    tpu.vector_store %arg5[%c32, %c0_26], %25 {strides = array<i32>} : memref<68x512xf32, #tpu.memory_space<vmem>>, vector<4x512xf32>,
    %c0_27 = arith.constant 0 : index
    %c0_28 = arith.constant 0 : index
    %c231 = arith.constant 231 : index
    %27 = vector.load %arg1[%c0_27, %c0_28, %c231] : memref<1x4x1152xf32, #tpu.memory_space<vmem>>, vector<1x4x512xf32>
    %28 = vector.shape_cast %27 : vector<1x4x512xf32> to vector<4x512xf32>
    %c36 = arith.constant 36 : index
    %c0_29 = arith.constant 0 : index
    %29 = vector.load %arg5[%c36, %c0_29] : memref<68x512xf32, #tpu.memory_space<vmem>>, vector<4x512xf32>
    tpu.vector_store %arg5[%c36, %c0_29], %28 {strides = array<i32>} : memref<68x512xf32, #tpu.memory_space<vmem>>, vector<4x512xf32>,
    %c0_30 = arith.constant 0 : index
    %c0_31 = arith.constant 0 : index
    %c198 = arith.constant 198 : index
    %30 = vector.load %arg1[%c0_30, %c0_31, %c198] : memref<1x4x1152xf32, #tpu.memory_space<vmem>>, vector<1x4x512xf32>
    %31 = vector.shape_cast %30 : vector<1x4x512xf32> to vector<4x512xf32>
    %c40 = arith.constant 40 : index
    %c0_32 = arith.constant 0 : index
    %32 = vector.load %arg5[%c40, %c0_32] : memref<68x512xf32, #tpu.memory_space<vmem>>, vector<4x512xf32>
    tpu.vector_store %arg5[%c40, %c0_32], %31 {strides = array<i32>} : memref<68x512xf32, #tpu.memory_space<vmem>>, vector<4x512xf32>,
    %c0_33 = arith.constant 0 : index
    %c0_34 = arith.constant 0 : index
    %c165 = arith.constant 165 : index
    %33 = vector.load %arg1[%c0_33, %c0_34, %c165] : memref<1x4x1152xf32, #tpu.memory_space<vmem>>, vector<1x4x512xf32>
    %34 = vector.shape_cast %33 : vector<1x4x512xf32> to vector<4x512xf32>
    %c44 = arith.constant 44 : index
    %c0_35 = arith.constant 0 : index
    %35 = vector.load %arg5[%c44, %c0_35] : memref<68x512xf32, #tpu.memory_space<vmem>>, vector<4x512xf32>
    tpu.vector_store %arg5[%c44, %c0_35], %34 {strides = array<i32>} : memref<68x512xf32, #tpu.memory_space<vmem>>, vector<4x512xf32>,
    %c0_36 = arith.constant 0 : index
    %c0_37 = arith.constant 0 : index
    %c132 = arith.constant 132 : index
    %36 = vector.load %arg1[%c0_36, %c0_37, %c132] : memref<1x4x1152xf32, #tpu.memory_space<vmem>>, vector<1x4x512xf32>
    %37 = vector.shape_cast %36 : vector<1x4x512xf32> to vector<4x512xf32>
    %c48 = arith.constant 48 : index
    %c0_38 = arith.constant 0 : index
    %38 = vector.load %arg5[%c48, %c0_38] : memref<68x512xf32, #tpu.memory_space<vmem>>, vector<4x512xf32>
    tpu.vector_store %arg5[%c48, %c0_38], %37 {strides = array<i32>} : memref<68x512xf32, #tpu.memory_space<vmem>>, vector<4x512xf32>,
    %c0_39 = arith.constant 0 : index
    %c0_40 = arith.constant 0 : index
    %c99 = arith.constant 99 : index
    %39 = vector.load %arg1[%c0_39, %c0_40, %c99] : memref<1x4x1152xf32, #tpu.memory_space<vmem>>, vector<1x4x512xf32>
    %40 = vector.shape_cast %39 : vector<1x4x512xf32> to vector<4x512xf32>
    %c52 = arith.constant 52 : index
    %c0_41 = arith.constant 0 : index
    %41 = vector.load %arg5[%c52, %c0_41] : memref<68x512xf32, #tpu.memory_space<vmem>>, vector<4x512xf32>
    tpu.vector_store %arg5[%c52, %c0_41], %40 {strides = array<i32>} : memref<68x512xf32, #tpu.memory_space<vmem>>, vector<4x512xf32>,
    %c0_42 = arith.constant 0 : index
    %c0_43 = arith.constant 0 : index
    %c66 = arith.constant 66 : index
    %42 = vector.load %arg1[%c0_42, %c0_43, %c66] : memref<1x4x1152xf32, #tpu.memory_space<vmem>>, vector<1x4x512xf32>
    %43 = vector.shape_cast %42 : vector<1x4x512xf32> to vector<4x512xf32>
    %c56 = arith.constant 56 : index
    %c0_44 = arith.constant 0 : index
    %44 = vector.load %arg5[%c56, %c0_44] : memref<68x512xf32, #tpu.memory_space<vmem>>, vector<4x512xf32>
    tpu.vector_store %arg5[%c56, %c0_44], %43 {strides = array<i32>} : memref<68x512xf32, #tpu.memory_space<vmem>>, vector<4x512xf32>,
    %c0_45 = arith.constant 0 : index
    %c0_46 = arith.constant 0 : index
    %c33 = arith.constant 33 : index
    %45 = vector.load %arg1[%c0_45, %c0_46, %c33] : memref<1x4x1152xf32, #tpu.memory_space<vmem>>, vector<1x4x512xf32>
    %46 = vector.shape_cast %45 : vector<1x4x512xf32> to vector<4x512xf32>
    %c60 = arith.constant 60 : index
    %c0_47 = arith.constant 0 : index
    %47 = vector.load %arg5[%c60, %c0_47] : memref<68x512xf32, #tpu.memory_space<vmem>>, vector<4x512xf32>
    tpu.vector_store %arg5[%c60, %c0_47], %46 {strides = array<i32>} : memref<68x512xf32, #tpu.memory_space<vmem>>, vector<4x512xf32>,
    %c0_48 = arith.constant 0 : index
    %c0_49 = arith.constant 0 : index
    %c0_50 = arith.constant 0 : index
    %48 = vector.load %arg1[%c0_48, %c0_49, %c0_50] : memref<1x4x1152xf32, #tpu.memory_space<vmem>>, vector<1x4x512xf32>
    %49 = vector.shape_cast %48 : vector<1x4x512xf32> to vector<4x512xf32>
    %c64 = arith.constant 64 : index
    %c0_51 = arith.constant 0 : index
    %50 = vector.load %arg5[%c64, %c0_51] : memref<68x512xf32, #tpu.memory_space<vmem>>, vector<4x512xf32>
    tpu.vector_store %arg5[%c64, %c0_51], %49 {strides = array<i32>} : memref<68x512xf32, #tpu.memory_space<vmem>>, vector<4x512xf32>,
    %c0_52 = arith.constant 0 : index
    %c0_53 = arith.constant 0 : index
    %51 = vector.load %arg2[%c0_52, %c0_53] : memref<8x68xf32, #tpu.memory_space<vmem>>, vector<8x68xf32>
    %c0_54 = arith.constant 0 : index
    %c0_55 = arith.constant 0 : index
    %52 = vector.load %arg5[%c0_54, %c0_55] : memref<68x512xf32, #tpu.memory_space<vmem>>, vector<68x512xf32>
    %cst = arith.constant dense<0.000000e+00> : vector<8x512xf32>
    %53 = tpu.matmul %51, %52, %cst {dimension_numbers = #tpu.dot_dimension_numbers<[1], [0], [0], [1], [0, 0, 1, 1], [], []>} : vector<8x68xf32>, vector<68x512xf32>, vector<8x512xf32> -> vector<8x512xf32>
    %c0_56 = arith.constant 0 : index
    %c0_57 = arith.constant 0 : index
    %54 = vector.load %arg3[%c0_56, %c0_57] : memref<8x512xf32, #tpu.memory_space<vmem>>, vector<8x512xf32>
    %55 = arith.addf %53, %54 : vector<8x512xf32>
    %c0_58 = arith.constant 0 : index
    %c0_59 = arith.constant 0 : index
    %c0_60 = arith.constant 0 : index
    %56 = vector.load %arg4[%c0_58, %c0_59, %c0_60] : memref<1x8x512xf32, #tpu.memory_space<vmem>>, vector<1x8x512xf32>
    %57 = vector.shape_cast %56 : vector<1x8x512xf32> to vector<8x512xf32>
    %58 = vector.shape_cast %55 : vector<8x512xf32> to vector<1x8x512xf32>
    tpu.vector_store %arg4[%c0_58, %c0_59, %c0_60], %58 {strides = array<i32>} : memref<1x8x512xf32, #tpu.memory_space<vmem>>, vector<1x8x512xf32>,
    return
  }
  func.func @transform_0(%arg0: i32) -> (i32, i32, i32) {
    %c0_i32 = arith.constant 0 : i32
    %c0_i32_0 = arith.constant 0 : i32
    %c0_i32_1 = arith.constant 0 : i32
    return %arg0, %c0_i32, %c0_i32_0 : i32, i32, i32
  }
  func.func @transform_1(%arg0: i32) -> (i32, i32) {
    %c0_i32 = arith.constant 0 : i32
    %c0_i32_0 = arith.constant 0 : i32
    %c0_i32_1 = arith.constant 0 : i32
    return %c0_i32, %c0_i32_0 : i32, i32
  }
  func.func @transform_2(%arg0: i32) -> (i32, i32) {
    %c0_i32 = arith.constant 0 : i32
    %c0_i32_0 = arith.constant 0 : i32
    %c0_i32_1 = arith.constant 0 : i32
    return %c0_i32, %c0_i32_0 : i32, i32
  }
  func.func @transform_3(%arg0: i32) -> (i32, i32, i32) {
    %c0_i32 = arith.constant 0 : i32
    %c0_i32_0 = arith.constant 0 : i32
    %c0_i32_1 = arith.constant 0 : i32
    return %arg0, %c0_i32, %c0_i32_0 : i32, i32, i32
  }
}

</mosaic_0001>

<llo_original>
// kernel: tpu_custom_call.1
$region0: #{tpu_custom_call.1}
  #allocation0 [shape = 'u32[]', space=smem, size = 0x4, offset = 0x4, fixed_abs, tag = 'smem constant byte address 0x4 - core index']
  #allocation1 [shape = 'u32[72,128]{1,0:T(1,128)}', space=vmem, size = 0x9000, scoped, tag = 'internal scratch']
  #allocation2 [shape = 'f32[68,512]{1,0:T(8,128)}', space=vmem, size = 0x24000, scoped, tag = 'scratch operand']
  %s0 = inlined_call_operand.hbm [shape: f32[2,4,1152], index: 0, kind: input, shape index: {}]
  %s1 = inlined_call_operand.hbm [shape: f32[8,68], index: 1, kind: input, shape index: {}]
  %s2 = inlined_call_operand.hbm [shape: f32[8,512], index: 2, kind: input, shape index: {}]
  %s3 = inlined_call_operand.hbm [shape: f32[2,8,512], index: 3, kind: output, shape index: {}]
  %s4 = sld [smem:[#allocation0]]
  $region57: #{tpu_custom_call.1} parent=0
    _
  %s6 = ssub.s32 1, %s4
  %s7 = scalar_select 0, %s6, %s4
  $region1: #{tpu_custom_call.1} parent=0
    #allocation3 [shape = 'u8[36864]{0}', space=vmem, size = 0x9000, scoped, tag = 'input window, operand 0']
    #allocation4 [shape = 's32[2]{0}', space=sflag, size = 0x8, scoped, tag = 'scoped memory for tpu_custom_call.1']
    #allocation5 [shape = 's32[2]{0}', space=sflag, size = 0x8, scoped, tag = 'scoped memory for tpu_custom_call.1']
    #allocation6 [shape = 'u8[4096]{0}', space=vmem, size = 0x1000, scoped, tag = 'input window, operand 1, single buffered']
    #allocation7 [shape = 's32[1]{0}', space=sflag, size = 0x4, scoped, tag = 'scoped memory for tpu_custom_call.1']
    #allocation8 [shape = 'u8[16384]{0}', space=vmem, size = 0x4000, scoped, tag = 'input window, operand 2, single buffered']
    #allocation9 [shape = 'u8[32768]{0}', space=vmem, size = 0x8000, scoped, tag = 'output window, operand 0']
    %8 = vsyncpa [#allocation4], 0
    %s9 = scalar_lea.sflag [#allocation4], 1
    %10 = vsyncpa %s9, 0
    %11 = vsyncpa [#allocation7], 0
    %12 = vsyncpa [#allocation5], 0
    %s13 = scalar_lea.sflag [#allocation5], 1
    %14 = vsyncpa %s13, 0
    loop: start=0, step=1, limit=4
    $region2: #{tpu_custom_call.1} parent=1 // loop_pre_header
      _
    $region3: #{tpu_custom_call.1} parent=1 // loop_header
      %s16 = sphi 0, %s20
      %p17 = scmp.ge.s32.totalorder %s16, 4
      %s26 = sphi 0, %s28
      %s29 = sphi 0, %s26
      %s30 = sphi 0, %s29
      %s46 = sphi 0, %s30
      %s50 = sphi 0, %s50
      %s52 = sphi 0, %s50
      %s53 = sphi 0, %s52
      %s67 = sphi 0, %s53
      %s71 = sphi 0, %s71
      %s73 = sphi 0, %s71
      %s74 = sphi 0, %s73
      %s88 = sphi 0, %s74
      %s94 = sphi 0, %s96
      %s97 = sphi 0, %s94
      %s98 = sphi 0, %s97
      %s114 = sphi 0, %s98
    $region4: #{tpu_custom_call.1} parent=1 // loop_header_branch
      %19 = sbr.rel (%p17) target = $region8
    $region5: #{tpu_custom_call.1} parent=1 // loop_body
      %s21 = ssub.s32 %s16, 1
      %s22 = ssub.s32 %s16, 2
      %s23 = sadd.s32 %s16, 1
      %s24 = ssub.s32 %s16, %s23
      %p25 = scmp.eq.s32.totalorder %s24, 0
      %s27 = sadd.s32 %s26, 1
      %s28 = scalar_select %p25, %s26, %s27
      %p31 = pneg %p25
      %p32 = scmp.eq.s32.totalorder %s16, 1
      %p33 = por %p31, %p32
      %p34 = scmp.ne.s32.totalorder %s26, %s29
      %p35 = scmp.eq.s32.totalorder %s16, 0
      %p36 = por %p34, %p35
      %p37 = scmp.ne.s32.totalorder %s26, %s29
      %p38 = scmp.eq.s32.totalorder %s21, 1
      %p39 = por %p37, %p38
      %p40 = scmp.ne.s32.totalorder %s29, %s30
      %p41 = scmp.eq.s32.totalorder %s21, 0
      %p42 = por %p40, %p41
      %p43 = scmp.ne.s32.totalorder %s29, %s30
      %p44 = scmp.eq.s32.totalorder %s22, 1
      %p45 = por %p43, %p44
      %p47 = scmp.ne.s32.totalorder %s30, %s46
      %p48 = scmp.eq.s32.totalorder %s22, 0
      %p49 = por %p47, %p48
      %s51 = sadd.s32 %s50, 1
      %p54 = scmp.eq.s32.totalorder %s16, 1
      %p55 = scmp.ne.s32.totalorder %s50, %s52
      %p56 = scmp.eq.s32.totalorder %s16, 0
      %p57 = por %p55, %p56
      %p58 = scmp.ne.s32.totalorder %s50, %s52
      %p59 = scmp.eq.s32.totalorder %s21, 1
      %p60 = por %p58, %p59
      %p61 = scmp.ne.s32.totalorder %s52, %s53
      %p62 = scmp.eq.s32.totalorder %s21, 0
      %p63 = por %p61, %p62
      %p64 = scmp.ne.s32.totalorder %s52, %s53
      %p65 = scmp.eq.s32.totalorder %s22, 1
      %p66 = por %p64, %p65
      %p68 = scmp.ne.s32.totalorder %s53, %s67
      %p69 = scmp.eq.s32.totalorder %s22, 0
      %p70 = por %p68, %p69
      %s72 = sadd.s32 %s71, 1
      %p75 = scmp.eq.s32.totalorder %s16, 1
      %p76 = scmp.ne.s32.totalorder %s71, %s73
      %p77 = scmp.eq.s32.totalorder %s16, 0
      %p78 = por %p76, %p77
      %p79 = scmp.ne.s32.totalorder %s71, %s73
      %p80 = scmp.eq.s32.totalorder %s21, 1
      %p81 = por %p79, %p80
      %p82 = scmp.ne.s32.totalorder %s73, %s74
      %p83 = scmp.eq.s32.totalorder %s21, 0
      %p84 = por %p82, %p83
      %p85 = scmp.ne.s32.totalorder %s73, %s74
      %p86 = scmp.eq.s32.totalorder %s22, 1
      %p87 = por %p85, %p86
      %p89 = scmp.ne.s32.totalorder %s74, %s88
      %p90 = scmp.eq.s32.totalorder %s22, 0
      %p91 = por %p89, %p90
      %s92 = ssub.s32 %s16, %s23
      %p93 = scmp.eq.s32.totalorder %s92, 0
      %s95 = sadd.s32 %s94, 1
      %s96 = scalar_select %p93, %s94, %s95
      %p99 = pneg %p93
      %p100 = scmp.eq.s32.totalorder %s16, 1
      %p101 = por %p99, %p100
      %p102 = scmp.ne.s32.totalorder %s94, %s97
      %p103 = scmp.eq.s32.totalorder %s16, 0
      %p104 = por %p102, %p103
      %p105 = scmp.ne.s32.totalorder %s94, %s97
      %p106 = scmp.eq.s32.totalorder %s21, 1
      %p107 = por %p105, %p106
      %p108 = scmp.ne.s32.totalorder %s97, %s98
      %p109 = scmp.eq.s32.totalorder %s21, 0
      %p110 = por %p108, %p109
      %p111 = scmp.ne.s32.totalorder %s97, %s98
      %p112 = scmp.eq.s32.totalorder %s22, 1
      %p113 = por %p111, %p112
      %p115 = scmp.ne.s32.totalorder %s98, %s114
      %p116 = scmp.eq.s32.totalorder %s22, 0
      %p117 = por %p115, %p116
      %p118 = scmp.le.s32.totalorder 1, %s16
      %p119 = scmp.lt.s32.totalorder %s16, 3
      %p120 = pnand %p118, %p119
      %p121 = pneg %p120
      // Predicated region
      $region9: #{tpu_custom_call.1} parent=5 // pred_check
        _
      $region10: #{tpu_custom_call.1} parent=5 // pred_check_branch
        %123 = sbr.rel (%p120) target = $region12
      $region11: #{tpu_custom_call.1} parent=5 // pred_region
        %s124 = ssub.s32 %s16, 1
        // Predicated region
        $region13: #{tpu_custom_call.1} parent=11 // pred_check
          %p125 = pneg %p63
        $region14: #{tpu_custom_call.1} parent=11 // pred_check_branch
          %127 = sbr.rel (%p125) target = $region16
        $region15: #{tpu_custom_call.1} parent=11 // pred_region
          %129 = vsyncadd [#allocation7], 0
          %s131 = sshll.u32 %s1, 4
          %s132 = int_to_ptr.hbm [resolvable:$true] %s131
          %s133 = sshll.u32 [#allocation6], 4
          %s134 = int_to_ptr.vmem [resolvable:$true] %s133
          %136 = dma.hbm_to_vmem [thread:$0]  %s132, 128, %s134, [#allocation7]
        $region16: #{tpu_custom_call.1} parent=11 // pred_fallthru
          _
        // Predicated region
        $region17: #{tpu_custom_call.1} parent=11 // pred_check
          %p137 = pneg %p84
        $region18: #{tpu_custom_call.1} parent=11 // pred_check_branch
          %139 = sbr.rel (%p137) target = $region20
        $region19: #{tpu_custom_call.1} parent=11 // pred_region
          %141 = vsyncadd [#allocation7], 0
          %s143 = sshll.u32 %s2, 4
          %s144 = int_to_ptr.hbm [resolvable:$true] %s143
          %s145 = sshll.u32 [#allocation8], 4
          %s146 = int_to_ptr.vmem [resolvable:$true] %s145
          %148 = dma.hbm_to_vmem [thread:$0]  %s144, 512, %s146, [#allocation7]
        $region20: #{tpu_custom_call.1} parent=11 // pred_fallthru
          _
      $region12: #{tpu_custom_call.1} parent=5 // pred_fallthru
        _
      %p149 = scmp.lt.s32.totalorder %s16, 2
      // Predicated region
      $region21: #{tpu_custom_call.1} parent=5 // pred_check
        %p150 = pneg %p149
      $region22: #{tpu_custom_call.1} parent=5 // pred_check_branch
        %152 = sbr.rel (%p150) target = $region24
      $region23: #{tpu_custom_call.1} parent=5 // pred_region
        // Predicated region
        $region25: #{tpu_custom_call.1} parent=23 // pred_check
          %p153 = pneg %p36
        $region26: #{tpu_custom_call.1} parent=23 // pred_check_branch
          %155 = sbr.rel (%p153) target = $region28
        $region27: #{tpu_custom_call.1} parent=23 // pred_region
          %s156 = sand.u32 %s26, 1
          %s157 = scalar_lea.sflag [#allocation4], %s156
          %s158 = sand.u32 %s26, 1
          %s159 = smul.addr %s158, 36
          %s160 = scalar_lea.vmem [#allocation3], %s159
          %162 = vsyncadd %s157, 0
          %s163 = smul.addr %s16, 9
          %s164 = smul.addr %s163, 4
          %s165 = scalar_lea.hbm %s0, %s164
          %s167 = sshll.u32 %s165, 4
          %s168 = int_to_ptr.hbm [resolvable:$true] %s167
          %s169 = sshll.u32 %s160, 4
          %s170 = int_to_ptr.vmem [resolvable:$true] %s169
          %172 = dma.hbm_to_vmem [thread:$0]  %s168, 576, %s170, %s157
        $region28: #{tpu_custom_call.1} parent=23 // pred_fallthru
          _
      $region24: #{tpu_custom_call.1} parent=5 // pred_fallthru
        _
      %p173 = scmp.le.s32.totalorder 1, %s16
      %p174 = scmp.lt.s32.totalorder %s16, 3
      %p175 = pnand %p173, %p174
      %p176 = pneg %p175
      // Predicated region
      $region29: #{tpu_custom_call.1} parent=5 // pred_check
        _
      $region30: #{tpu_custom_call.1} parent=5 // pred_check_branch
        %178 = sbr.rel (%p175) target = $region32
      $region31: #{tpu_custom_call.1} parent=5 // pred_region
        %s179 = ssub.s32 %s16, 1
        %s180 = sand.u32 %s29, 1
        %s181 = scalar_lea.sflag [#allocation4], %s180
        %s182 = sand.u32 %s29, 1
        %s183 = smul.addr %s182, 36
        %s184 = scalar_lea.vmem [#allocation3], %s183
        // Predicated region
        $region33: #{tpu_custom_call.1} parent=31 // pred_check
          %p185 = pneg %p42
        $region34: #{tpu_custom_call.1} parent=31 // pred_check_branch
          %187 = sbr.rel (%p185) target = $region36
        $region35: #{tpu_custom_call.1} parent=31 // pred_region
          %189 = dma.done %s181, 576
        $region36: #{tpu_custom_call.1} parent=31 // pred_fallthru
          _
        // Predicated region
        $region37: #{tpu_custom_call.1} parent=31 // pred_check
          %p190 = pneg %p63
        $region38: #{tpu_custom_call.1} parent=31 // pred_check_branch
          %192 = sbr.rel (%p190) target = $region40
        $region39: #{tpu_custom_call.1} parent=31 // pred_region
          %194 = dma.done [#allocation7], 128
        $region40: #{tpu_custom_call.1} parent=31 // pred_fallthru
          _
        // Predicated region
        $region41: #{tpu_custom_call.1} parent=31 // pred_check
          %p195 = pneg %p84
        $region42: #{tpu_custom_call.1} parent=31 // pred_check_branch
          %197 = sbr.rel (%p195) target = $region44
        $region43: #{tpu_custom_call.1} parent=31 // pred_region
          %199 = dma.done [#allocation7], 512
        $region44: #{tpu_custom_call.1} parent=31 // pred_fallthru
          _
        %s200 = sand.u32 %s29, 1
        %s201 = scalar_lea.sflag [#allocation4], %s200
        %s202 = sand.u32 %s29, 1
        %s203 = smul.addr %s202, 36
        %s204 = scalar_lea.vmem [#allocation3], %s203
        %p205 = pneg %p42
        %p206 = pneg %p39
        %p207 = pneg %p63
        %p208 = pneg %p60
        %p209 = pneg %p84
        %p210 = pneg %p81
        %p211 = pneg %p110
        %p212 = pneg %p107
        %s213 = sand.u32 %s97, 1
        %s214 = scalar_lea.sflag [#allocation5], %s213
        %s215 = sand.u32 %s97, 1
        %s216 = smul.addr %s215, 32
        %s217 = scalar_lea.vmem [#allocation9], %s216
        %v218 = vld [vmem:[%s184 + $0x10] sm:$0xff]
        %v219 = vld [vmem:[%s184 + $0x18] sm:$0xff]
        %v220 = vld [vmem:[%s184 + $0x20] sm:$0xf]
        %224 = vst [vmem:[#allocation1] ss:$2 sm:$0xff] %v218
        %s225 = scalar_lea.vmem [#allocation1], 16
        %226 = vst [vmem:[%s225] ss:$2 sm:$0xff] %v219
        %s227 = scalar_lea.vmem [#allocation1], 32
        %228 = vst [vmem:[%s227] ss:$2 sm:$0xff] %v220
        %v229 = vld.sshfl [vmem:[#allocation1] sm:$0xff pattern:$0x75316420]
        %v230 = vld.sshfl [vmem:[#allocation1 + $0x8] sm:$0xff pattern:$0x75316420]
        %v231 = vld.sshfl [vmem:[#allocation1 + $0x10] sm:$0xff pattern:$0x75316420]
        %v232 = vld.sshfl [vmem:[#allocation1 + $0x18] sm:$0xff pattern:$0x75316420]
        %v233 = vld.sshfl [vmem:[#allocation1 + $0x20] sm:$0xff pattern:$0x75316420]
        %234 = vrot.lane.b32.xlu0 %v229, 112
        %v235 = vpop.permute.xlu0 %234
        %236 = vrot.lane.b32.xlu0 %v230, 112
        %v237 = vpop.permute.xlu0 %236
        %238 = vrot.lane.b32.xlu0 %v231, 112
        %v239 = vpop.permute.xlu0 %238
        %240 = vrot.lane.b32.xlu0 %v232, 112
        %v241 = vpop.permute.xlu0 %240
        %242 = vrot.lane.b32.xlu0 %v233, 112
        %v243 = vpop.permute.xlu0 %242
        %vm244 = vcmask 916480
        %v245 = vsel %vm244, %v235, %v237
        %v246 = vsel %vm244, %v237, %v239
        %v247 = vsel %vm244, %v239, %v241
        %v248 = vsel %vm244, %v241, %v243
        %253 = vst [vmem:[#allocation2] sm:$0xf] %v245
        %254 = vst [vmem:[#allocation2 + $0x8] sm:$0xf] %v246
        %255 = vst [vmem:[#allocation2 + $0x10] sm:$0xf] %v247
        %256 = vst [vmem:[#allocation2 + $0x18] sm:$0xf] %v248
        %v257 = vld [vmem:[%s184 + $0xc] sm:$0xff]
        %v258 = vld [vmem:[%s184 + $0x14] sm:$0xff]
        %v259 = vld [vmem:[%s184 + $0x1c] sm:$0xf]
        %s263 = scalar_lea.vmem [#allocation1], 1
        %264 = vst [vmem:[%s263] ss:$2 sm:$0xff] %v257
        %s265 = scalar_lea.vmem [#allocation1], 17
        %266 = vst [vmem:[%s265] ss:$2 sm:$0xff] %v258
        %s267 = scalar_lea.vmem [#allocation1], 33
        %268 = vst [vmem:[%s267] ss:$2 sm:$0xff] %v259
        %v269 = vld.sshfl [vmem:[#allocation1] sm:$0xff pattern:$0x75316420]
        %v270 = vld.sshfl [vmem:[#allocation1 + $0x8] sm:$0xff pattern:$0x75316420]
        %v271 = vld.sshfl [vmem:[#allocation1 + $0x10] sm:$0xff pattern:$0x75316420]
        %v272 = vld.sshfl [vmem:[#allocation1 + $0x18] sm:$0xff pattern:$0x75316420]
        %v273 = vld.sshfl [vmem:[#allocation1 + $0x20] sm:$0xff pattern:$0x75316420]
        %274 = vrot.lane.b32.xlu0 %v269, 17
        %v275 = vpop.permute.xlu0 %274
        %276 = vrot.lane.b32.xlu0 %v270, 17
        %v277 = vpop.permute.xlu0 %276
        %278 = vrot.lane.b32.xlu0 %v271, 17
        %v279 = vpop.permute.xlu0 %278
        %280 = vrot.lane.b32.xlu0 %v272, 17
        %v281 = vpop.permute.xlu0 %280
        %282 = vrot.lane.b32.xlu0 %v273, 17
        %v283 = vpop.permute.xlu0 %282
        %vm284 = vcmask 138240
        %v285 = vsel %vm284, %v275, %v277
        %v286 = vsel %vm284, %v277, %v279
        %v287 = vsel %vm284, %v279, %v281
        %v288 = vsel %vm284, %v281, %v283
        %293 = vst [vmem:[#allocation2] sm:$0xf0] %v285
        %294 = vst [vmem:[#allocation2 + $0x8] sm:$0xf0] %v286
        %295 = vst [vmem:[#allocation2 + $0x10] sm:$0xf0] %v287
        %296 = vst [vmem:[#allocation2 + $0x18] sm:$0xf0] %v288
        %v297 = vld [vmem:[%s184 + $0xc] sm:$0xff]
        %v298 = vld [vmem:[%s184 + $0x14] sm:$0xff]
        %v299 = vld [vmem:[%s184 + $0x1c] sm:$0xf]
        %303 = vst [vmem:[#allocation1] ss:$2 sm:$0xff] %v297
        %s304 = scalar_lea.vmem [#allocation1], 16
        %305 = vst [vmem:[%s304] ss:$2 sm:$0xff] %v298
        %s306 = scalar_lea.vmem [#allocation1], 32
        %307 = vst [vmem:[%s306] ss:$2 sm:$0xff] %v299
        %v308 = vld.sshfl [vmem:[#allocation1] sm:$0xff pattern:$0x75316420]
        %v309 = vld.sshfl [vmem:[#allocation1 + $0x8] sm:$0xff pattern:$0x75316420]
        %v310 = vld.sshfl [vmem:[#allocation1 + $0x10] sm:$0xff pattern:$0x75316420]
        %v311 = vld.sshfl [vmem:[#allocation1 + $0x18] sm:$0xff pattern:$0x75316420]
        %v312 = vld.sshfl [vmem:[#allocation1 + $0x20] sm:$0xff pattern:$0x75316420]
        %313 = vrot.lane.b32.xlu0 %v308, 50
        %v314 = vpop.permute.xlu0 %313
        %315 = vrot.lane.b32.xlu0 %v309, 50
        %v316 = vpop.permute.xlu0 %315
        %317 = vrot.lane.b32.xlu0 %v310, 50
        %v318 = vpop.permute.xlu0 %317
        %319 = vrot.lane.b32.xlu0 %v311, 50
        %v320 = vpop.permute.xlu0 %319
        %321 = vrot.lane.b32.xlu0 %v312, 50
        %v322 = vpop.permute.xlu0 %321
        %vm323 = vcmask 408576
        %v324 = vsel %vm323, %v314, %v316
        %v325 = vsel %vm323, %v316, %v318
        %v326 = vsel %vm323, %v318, %v320
        %v327 = vsel %vm323, %v320, %v322
        %332 = vst [vmem:[#allocation2 + $0x20] sm:$0xf] %v324
        %333 = vst [vmem:[#allocation2 + $0x28] sm:$0xf] %v325
        %334 = vst [vmem:[#allocation2 + $0x30] sm:$0xf] %v326
        %335 = vst [vmem:[#allocation2 + $0x38] sm:$0xf] %v327
        %v336 = vld [vmem:[%s184 + $0xc] sm:$0xff]
        %v337 = vld [vmem:[%s184 + $0x14] sm:$0xff]
        %v338 = vld [vmem:[%s184 + $0x1c] sm:$0xf]
        %s342 = scalar_lea.vmem [#allocation1], 1
        %343 = vst [vmem:[%s342] ss:$2 sm:$0xff] %v336
        %s344 = scalar_lea.vmem [#allocation1], 17
        %345 = vst [vmem:[%s344] ss:$2 sm:$0xff] %v337
        %s346 = scalar_lea.vmem [#allocation1], 33
        %347 = vst [vmem:[%s346] ss:$2 sm:$0xff] %v338
        %v348 = vld.sshfl [vmem:[#allocation1] sm:$0xff pattern:$0x75316420]
        %v349 = vld.sshfl [vmem:[#allocation1 + $0x8] sm:$0xff pattern:$0x75316420]
        %v350 = vld.sshfl [vmem:[#allocation1 + $0x10] sm:$0xff pattern:$0x75316420]
        %v351 = vld.sshfl [vmem:[#allocation1 + $0x18] sm:$0xff pattern:$0x75316420]
        %v352 = vld.sshfl [vmem:[#allocation1 + $0x20] sm:$0xff pattern:$0x75316420]
        %353 = vrot.lane.b32.xlu0 %v348, 83
        %v354 = vpop.permute.xlu0 %353
        %355 = vrot.lane.b32.xlu0 %v349, 83
        %v356 = vpop.permute.xlu0 %355
        %357 = vrot.lane.b32.xlu0 %v350, 83
        %v358 = vpop.permute.xlu0 %357
        %359 = vrot.lane.b32.xlu0 %v351, 83
        %v360 = vpop.permute.xlu0 %359
        %361 = vrot.lane.b32.xlu0 %v352, 83
        %v362 = vpop.permute.xlu0 %361
        %vm363 = vcmask 678912
        %v364 = vsel %vm363, %v354, %v356
        %v365 = vsel %vm363, %v356, %v358
        %v366 = vsel %vm363, %v358, %v360
        %v367 = vsel %vm363, %v360, %v362
        %372 = vst [vmem:[#allocation2 + $0x20] sm:$0xf0] %v364
        %373 = vst [vmem:[#allocation2 + $0x28] sm:$0xf0] %v365
        %374 = vst [vmem:[#allocation2 + $0x30] sm:$0xf0] %v366
        %375 = vst [vmem:[#allocation2 + $0x38] sm:$0xf0] %v367
        %v376 = vld [vmem:[%s184 + $0xc] sm:$0xff]
        %v377 = vld [vmem:[%s184 + $0x14] sm:$0xff]
        %v378 = vld [vmem:[%s184 + $0x1c] sm:$0xf]
        %382 = vst [vmem:[#allocation1] ss:$2 sm:$0xff] %v376
        %s383 = scalar_lea.vmem [#allocation1], 16
        %384 = vst [vmem:[%s383] ss:$2 sm:$0xff] %v377
        %s385 = scalar_lea.vmem [#allocation1], 32
        %386 = vst [vmem:[%s385] ss:$2 sm:$0xff] %v378
        %v387 = vld.sshfl [vmem:[#allocation1] sm:$0xff pattern:$0x75316420]
        %v388 = vld.sshfl [vmem:[#allocation1 + $0x8] sm:$0xff pattern:$0x75316420]
        %v389 = vld.sshfl [vmem:[#allocation1 + $0x10] sm:$0xff pattern:$0x75316420]
        %v390 = vld.sshfl [vmem:[#allocation1 + $0x18] sm:$0xff pattern:$0x75316420]
        %v391 = vld.sshfl [vmem:[#allocation1 + $0x20] sm:$0xff pattern:$0x75316420]
        %392 = vrot.lane.b32.xlu0 %v387, 116
        %v393 = vpop.permute.xlu0 %392
        %394 = vrot.lane.b32.xlu0 %v388, 116
        %v395 = vpop.permute.xlu0 %394
        %396 = vrot.lane.b32.xlu0 %v389, 116
        %v397 = vpop.permute.xlu0 %396
        %398 = vrot.lane.b32.xlu0 %v390, 116
        %v399 = vpop.permute.xlu0 %398
        %400 = vrot.lane.b32.xlu0 %v391, 116
        %v401 = vpop.permute.xlu0 %400
        %vm402 = vcmask 949248
        %v403 = vsel %vm402, %v393, %v395
        %v404 = vsel %vm402, %v395, %v397
        %v405 = vsel %vm402, %v397, %v399
        %v406 = vsel %vm402, %v399, %v401
        %411 = vst [vmem:[#allocation2 + $0x40] sm:$0xf] %v403
        %412 = vst [vmem:[#allocation2 + $0x48] sm:$0xf] %v404
        %413 = vst [vmem:[#allocation2 + $0x50] sm:$0xf] %v405
        %414 = vst [vmem:[#allocation2 + $0x58] sm:$0xf] %v406
        %v415 = vld [vmem:[%s184 + $0x8] sm:$0xff]
        %v416 = vld [vmem:[%s184 + $0x10] sm:$0xff]
        %v417 = vld [vmem:[%s184 + $0x18] sm:$0xf]
        %s421 = scalar_lea.vmem [#allocation1], 1
        %422 = vst [vmem:[%s421] ss:$2 sm:$0xff] %v415
        %s423 = scalar_lea.vmem [#allocation1], 17
        %424 = vst [vmem:[%s423] ss:$2 sm:$0xff] %v416
        %s425 = scalar_lea.vmem [#allocation1], 33
        %426 = vst [vmem:[%s425] ss:$2 sm:$0xff] %v417
        %v427 = vld.sshfl [vmem:[#allocation1] sm:$0xff pattern:$0x75316420]
        %v428 = vld.sshfl [vmem:[#allocation1 + $0x8] sm:$0xff pattern:$0x75316420]
        %v429 = vld.sshfl [vmem:[#allocation1 + $0x10] sm:$0xff pattern:$0x75316420]
        %v430 = vld.sshfl [vmem:[#allocation1 + $0x18] sm:$0xff pattern:$0x75316420]
        %v431 = vld.sshfl [vmem:[#allocation1 + $0x20] sm:$0xff pattern:$0x75316420]
        %432 = vrot.lane.b32.xlu0 %v427, 21
        %v433 = vpop.permute.xlu0 %432
        %434 = vrot.lane.b32.xlu0 %v428, 21
        %v435 = vpop.permute.xlu0 %434
        %436 = vrot.lane.b32.xlu0 %v429, 21
        %v437 = vpop.permute.xlu0 %436
        %438 = vrot.lane.b32.xlu0 %v430, 21
        %v439 = vpop.permute.xlu0 %438
        %440 = vrot.lane.b32.xlu0 %v431, 21
        %v441 = vpop.permute.xlu0 %440
        %vm442 = vcmask 171008
        %v443 = vsel %vm442, %v433, %v435
        %v444 = vsel %vm442, %v435, %v437
        %v445 = vsel %vm442, %v437, %v439
        %v446 = vsel %vm442, %v439, %v441
        %451 = vst [vmem:[#allocation2 + $0x40] sm:$0xf0] %v443
        %452 = vst [vmem:[#allocation2 + $0x48] sm:$0xf0] %v444
        %453 = vst [vmem:[#allocation2 + $0x50] sm:$0xf0] %v445
        %454 = vst [vmem:[#allocation2 + $0x58] sm:$0xf0] %v446
        %v455 = vld [vmem:[%s184 + $0x8] sm:$0xff]
        %v456 = vld [vmem:[%s184 + $0x10] sm:$0xff]
        %v457 = vld [vmem:[%s184 + $0x18] sm:$0xf]
        %461 = vst [vmem:[#allocation1] ss:$2 sm:$0xff] %v455
        %s462 = scalar_lea.vmem [#allocation1], 16
        %463 = vst [vmem:[%s462] ss:$2 sm:$0xff] %v456
        %s464 = scalar_lea.vmem [#allocation1], 32
        %465 = vst [vmem:[%s464] ss:$2 sm:$0xff] %v457
        %v466 = vld.sshfl [vmem:[#allocation1] sm:$0xff pattern:$0x75316420]
        %v467 = vld.sshfl [vmem:[#allocation1 + $0x8] sm:$0xff pattern:$0x75316420]
        %v468 = vld.sshfl [vmem:[#allocation1 + $0x10] sm:$0xff pattern:$0x75316420]
        %v469 = vld.sshfl [vmem:[#allocation1 + $0x18] sm:$0xff pattern:$0x75316420]
        %v470 = vld.sshfl [vmem:[#allocation1 + $0x20] sm:$0xff pattern:$0x75316420]
        %471 = vrot.lane.b32.xlu0 %v466, 54
        %v472 = vpop.permute.xlu0 %471
        %473 = vrot.lane.b32.xlu0 %v467, 54
        %v474 = vpop.permute.xlu0 %473
        %475 = vrot.lane.b32.xlu0 %v468, 54
        %v476 = vpop.permute.xlu0 %475
        %477 = vrot.lane.b32.xlu0 %v469, 54
        %v478 = vpop.permute.xlu0 %477
        %479 = vrot.lane.b32.xlu0 %v470, 54
        %v480 = vpop.permute.xlu0 %479
        %vm481 = vcmask 441344
        %v482 = vsel %vm481, %v472, %v474
        %v483 = vsel %vm481, %v474, %v476
        %v484 = vsel %vm481, %v476, %v478
        %v485 = vsel %vm481, %v478, %v480
        %490 = vst [vmem:[#allocation2 + $0x60] sm:$0xf] %v482
        %491 = vst [vmem:[#allocation2 + $0x68] sm:$0xf] %v483
        %492 = vst [vmem:[#allocation2 + $0x70] sm:$0xf] %v484
        %493 = vst [vmem:[#allocation2 + $0x78] sm:$0xf] %v485
        %v494 = vld [vmem:[%s184 + $0x8] sm:$0xff]
        %v495 = vld [vmem:[%s184 + $0x10] sm:$0xff]
        %v496 = vld [vmem:[%s184 + $0x18] sm:$0xf]
        %s500 = scalar_lea.vmem [#allocation1], 1
        %501 = vst [vmem:[%s500] ss:$2 sm:$0xff] %v494
        %s502 = scalar_lea.vmem [#allocation1], 17
        %503 = vst [vmem:[%s502] ss:$2 sm:$0xff] %v495
        %s504 = scalar_lea.vmem [#allocation1], 33
        %505 = vst [vmem:[%s504] ss:$2 sm:$0xff] %v496
        %v506 = vld.sshfl [vmem:[#allocation1] sm:$0xff pattern:$0x75316420]
        %v507 = vld.sshfl [vmem:[#allocation1 + $0x8] sm:$0xff pattern:$0x75316420]
        %v508 = vld.sshfl [vmem:[#allocation1 + $0x10] sm:$0xff pattern:$0x75316420]
        %v509 = vld.sshfl [vmem:[#allocation1 + $0x18] sm:$0xff pattern:$0x75316420]
        %v510 = vld.sshfl [vmem:[#allocation1 + $0x20] sm:$0xff pattern:$0x75316420]
        %511 = vrot.lane.b32.xlu0 %v506, 87
        %v512 = vpop.permute.xlu0 %511
        %513 = vrot.lane.b32.xlu0 %v507, 87
        %v514 = vpop.permute.xlu0 %513
        %515 = vrot.lane.b32.xlu0 %v508, 87
        %v516 = vpop.permute.xlu0 %515
        %517 = vrot.lane.b32.xlu0 %v509, 87
        %v518 = vpop.permute.xlu0 %517
        %519 = vrot.lane.b32.xlu0 %v510, 87
        %v520 = vpop.permute.xlu0 %519
        %vm521 = vcmask 711680
        %v522 = vsel %vm521, %v512, %v514
        %v523 = vsel %vm521, %v514, %v516
        %v524 = vsel %vm521, %v516, %v518
        %v525 = vsel %vm521, %v518, %v520
        %530 = vst [vmem:[#allocation2 + $0x60] sm:$0xf0] %v522
        %531 = vst [vmem:[#allocation2 + $0x68] sm:$0xf0] %v523
        %532 = vst [vmem:[#allocation2 + $0x70] sm:$0xf0] %v524
        %533 = vst [vmem:[#allocation2 + $0x78] sm:$0xf0] %v525
        %v534 = vld [vmem:[%s184 + $0x8] sm:$0xff]
        %v535 = vld [vmem:[%s184 + $0x10] sm:$0xff]
        %v536 = vld [vmem:[%s184 + $0x18] sm:$0xf]
        %540 = vst [vmem:[#allocation1] ss:$2 sm:$0xff] %v534
        %s541 = scalar_lea.vmem [#allocation1], 16
        %542 = vst [vmem:[%s541] ss:$2 sm:$0xff] %v535
        %s543 = scalar_lea.vmem [#allocation1], 32
        %544 = vst [vmem:[%s543] ss:$2 sm:$0xff] %v536
        %v545 = vld.sshfl [vmem:[#allocation1] sm:$0xff pattern:$0x75316420]
        %v546 = vld.sshfl [vmem:[#allocation1 + $0x8] sm:$0xff pattern:$0x75316420]
        %v547 = vld.sshfl [vmem:[#allocation1 + $0x10] sm:$0xff pattern:$0x75316420]
        %v548 = vld.sshfl [vmem:[#allocation1 + $0x18] sm:$0xff pattern:$0x75316420]
        %v549 = vld.sshfl [vmem:[#allocation1 + $0x20] sm:$0xff pattern:$0x75316420]
        %550 = vrot.lane.b32.xlu0 %v545, 120
        %v551 = vpop.permute.xlu0 %550
        %552 = vrot.lane.b32.xlu0 %v546, 120
        %v553 = vpop.permute.xlu0 %552
        %554 = vrot.lane.b32.xlu0 %v547, 120
        %v555 = vpop.permute.xlu0 %554
        %556 = vrot.lane.b32.xlu0 %v548, 120
        %v557 = vpop.permute.xlu0 %556
        %558 = vrot.lane.b32.xlu0 %v549, 120
        %v559 = vpop.permute.xlu0 %558
        %vm560 = vcmask 982016
        %v561 = vsel %vm560, %v551, %v553
        %v562 = vsel %vm560, %v553, %v555
        %v563 = vsel %vm560, %v555, %v557
        %v564 = vsel %vm560, %v557, %v559
        %569 = vst [vmem:[#allocation2 + $0x80] sm:$0xf] %v561
        %570 = vst [vmem:[#allocation2 + $0x88] sm:$0xf] %v562
        %571 = vst [vmem:[#allocation2 + $0x90] sm:$0xf] %v563
        %572 = vst [vmem:[#allocation2 + $0x98] sm:$0xf] %v564
        %v573 = vld [vmem:[%s184 + $0x4] sm:$0xff]
        %v574 = vld [vmem:[%s184 + $0xc] sm:$0xff]
        %v575 = vld [vmem:[%s184 + $0x14] sm:$0xf]
        %s579 = scalar_lea.vmem [#allocation1], 1
        %580 = vst [vmem:[%s579] ss:$2 sm:$0xff] %v573
        %s581 = scalar_lea.vmem [#allocation1], 17
        %582 = vst [vmem:[%s581] ss:$2 sm:$0xff] %v574
        %s583 = scalar_lea.vmem [#allocation1], 33
        %584 = vst [vmem:[%s583] ss:$2 sm:$0xff] %v575
        %v585 = vld.sshfl [vmem:[#allocation1] sm:$0xff pattern:$0x75316420]
        %v586 = vld.sshfl [vmem:[#allocation1 + $0x8] sm:$0xff pattern:$0x75316420]
        %v587 = vld.sshfl [vmem:[#allocation1 + $0x10] sm:$0xff pattern:$0x75316420]
        %v588 = vld.sshfl [vmem:[#allocation1 + $0x18] sm:$0xff pattern:$0x75316420]
        %v589 = vld.sshfl [vmem:[#allocation1 + $0x20] sm:$0xff pattern:$0x75316420]
        %590 = vrot.lane.b32.xlu0 %v585, 25
        %v591 = vpop.permute.xlu0 %590
        %592 = vrot.lane.b32.xlu0 %v586, 25
        %v593 = vpop.permute.xlu0 %592
        %594 = vrot.lane.b32.xlu0 %v587, 25
        %v595 = vpop.permute.xlu0 %594
        %596 = vrot.lane.b32.xlu0 %v588, 25
        %v597 = vpop.permute.xlu0 %596
        %598 = vrot.lane.b32.xlu0 %v589, 25
        %v599 = vpop.permute.xlu0 %598
        %vm600 = vcmask 203776
        %v601 = vsel %vm600, %v591, %v593
        %v602 = vsel %vm600, %v593, %v595
        %v603 = vsel %vm600, %v595, %v597
        %v604 = vsel %vm600, %v597, %v599
        %609 = vst [vmem:[#allocation2 + $0x80] sm:$0xf0] %v601
        %610 = vst [vmem:[#allocation2 + $0x88] sm:$0xf0] %v602
        %611 = vst [vmem:[#allocation2 + $0x90] sm:$0xf0] %v603
        %612 = vst [vmem:[#allocation2 + $0x98] sm:$0xf0] %v604
        %v613 = vld [vmem:[%s184 + $0x4] sm:$0xff]
        %v614 = vld [vmem:[%s184 + $0xc] sm:$0xff]
        %v615 = vld [vmem:[%s184 + $0x14] sm:$0xf]
        %619 = vst [vmem:[#allocation1] ss:$2 sm:$0xff] %v613
        %s620 = scalar_lea.vmem [#allocation1], 16
        %621 = vst [vmem:[%s620] ss:$2 sm:$0xff] %v614
        %s622 = scalar_lea.vmem [#allocation1], 32
        %623 = vst [vmem:[%s622] ss:$2 sm:$0xff] %v615
        %v624 = vld.sshfl [vmem:[#allocation1] sm:$0xff pattern:$0x75316420]
        %v625 = vld.sshfl [vmem:[#allocation1 + $0x8] sm:$0xff pattern:$0x75316420]
        %v626 = vld.sshfl [vmem:[#allocation1 + $0x10] sm:$0xff pattern:$0x75316420]
        %v627 = vld.sshfl [vmem:[#allocation1 + $0x18] sm:$0xff pattern:$0x75316420]
        %v628 = vld.sshfl [vmem:[#allocation1 + $0x20] sm:$0xff pattern:$0x75316420]
        %629 = vrot.lane.b32.xlu0 %v624, 58
        %v630 = vpop.permute.xlu0 %629
        %631 = vrot.lane.b32.xlu0 %v625, 58
        %v632 = vpop.permute.xlu0 %631
        %633 = vrot.lane.b32.xlu0 %v626, 58
        %v634 = vpop.permute.xlu0 %633
        %635 = vrot.lane.b32.xlu0 %v627, 58
        %v636 = vpop.permute.xlu0 %635
        %637 = vrot.lane.b32.xlu0 %v628, 58
        %v638 = vpop.permute.xlu0 %637
        %vm639 = vcmask 474112
        %v640 = vsel %vm639, %v630, %v632
        %v641 = vsel %vm639, %v632, %v634
        %v642 = vsel %vm639, %v634, %v636
        %v643 = vsel %vm639, %v636, %v638
        %648 = vst [vmem:[#allocation2 + $0xa0] sm:$0xf] %v640
        %649 = vst [vmem:[#allocation2 + $0xa8] sm:$0xf] %v641
        %650 = vst [vmem:[#allocation2 + $0xb0] sm:$0xf] %v642
        %651 = vst [vmem:[#allocation2 + $0xb8] sm:$0xf] %v643
        %v652 = vld [vmem:[%s184 + $0x4] sm:$0xff]
        %v653 = vld [vmem:[%s184 + $0xc] sm:$0xff]
        %v654 = vld [vmem:[%s184 + $0x14] sm:$0xf]
        %s658 = scalar_lea.vmem [#allocation1], 1
        %659 = vst [vmem:[%s658] ss:$2 sm:$0xff] %v652
        %s660 = scalar_lea.vmem [#allocation1], 17
        %661 = vst [vmem:[%s660] ss:$2 sm:$0xff] %v653
        %s662 = scalar_lea.vmem [#allocation1], 33
        %663 = vst [vmem:[%s662] ss:$2 sm:$0xff] %v654
        %v664 = vld.sshfl [vmem:[#allocation1] sm:$0xff pattern:$0x75316420]
        %v665 = vld.sshfl [vmem:[#allocation1 + $0x8] sm:$0xff pattern:$0x75316420]
        %v666 = vld.sshfl [vmem:[#allocation1 + $0x10] sm:$0xff pattern:$0x75316420]
        %v667 = vld.sshfl [vmem:[#allocation1 + $0x18] sm:$0xff pattern:$0x75316420]
        %v668 = vld.sshfl [vmem:[#allocation1 + $0x20] sm:$0xff pattern:$0x75316420]
        %669 = vrot.lane.b32.xlu0 %v664, 91
        %v670 = vpop.permute.xlu0 %669
        %671 = vrot.lane.b32.xlu0 %v665, 91
        %v672 = vpop.permute.xlu0 %671
        %673 = vrot.lane.b32.xlu0 %v666, 91
        %v674 = vpop.permute.xlu0 %673
        %675 = vrot.lane.b32.xlu0 %v667, 91
        %v676 = vpop.permute.xlu0 %675
        %677 = vrot.lane.b32.xlu0 %v668, 91
        %v678 = vpop.permute.xlu0 %677
        %vm679 = vcmask 744448
        %v680 = vsel %vm679, %v670, %v672
        %v681 = vsel %vm679, %v672, %v674
        %v682 = vsel %vm679, %v674, %v676
        %v683 = vsel %vm679, %v676, %v678
        %688 = vst [vmem:[#allocation2 + $0xa0] sm:$0xf0] %v680
        %689 = vst [vmem:[#allocation2 + $0xa8] sm:$0xf0] %v681
        %690 = vst [vmem:[#allocation2 + $0xb0] sm:$0xf0] %v682
        %691 = vst [vmem:[#allocation2 + $0xb8] sm:$0xf0] %v683
        %v692 = vld [vmem:[%s184 + $0x4] sm:$0xff]
        %v693 = vld [vmem:[%s184 + $0xc] sm:$0xff]
        %v694 = vld [vmem:[%s184 + $0x14] sm:$0xf]
        %698 = vst [vmem:[#allocation1] ss:$2 sm:$0xff] %v692
        %s699 = scalar_lea.vmem [#allocation1], 16
        %700 = vst [vmem:[%s699] ss:$2 sm:$0xff] %v693
        %s701 = scalar_lea.vmem [#allocation1], 32
        %702 = vst [vmem:[%s701] ss:$2 sm:$0xff] %v694
        %v703 = vld.sshfl [vmem:[#allocation1] sm:$0xff pattern:$0x75316420]
        %v704 = vld.sshfl [vmem:[#allocation1 + $0x8] sm:$0xff pattern:$0x75316420]
        %v705 = vld.sshfl [vmem:[#allocation1 + $0x10] sm:$0xff pattern:$0x75316420]
        %v706 = vld.sshfl [vmem:[#allocation1 + $0x18] sm:$0xff pattern:$0x75316420]
        %v707 = vld.sshfl [vmem:[#allocation1 + $0x20] sm:$0xff pattern:$0x75316420]
        %708 = vrot.lane.b32.xlu0 %v703, 124
        %v709 = vpop.permute.xlu0 %708
        %710 = vrot.lane.b32.xlu0 %v704, 124
        %v711 = vpop.permute.xlu0 %710
        %712 = vrot.lane.b32.xlu0 %v705, 124
        %v713 = vpop.permute.xlu0 %712
        %714 = vrot.lane.b32.xlu0 %v706, 124
        %v715 = vpop.permute.xlu0 %714
        %716 = vrot.lane.b32.xlu0 %v707, 124
        %v717 = vpop.permute.xlu0 %716
        %vm718 = vcmask 1014784
        %v719 = vsel %vm718, %v709, %v711
        %v720 = vsel %vm718, %v711, %v713
        %v721 = vsel %vm718, %v713, %v715
        %v722 = vsel %vm718, %v715, %v717
        %727 = vst [vmem:[#allocation2 + $0xc0] sm:$0xf] %v719
        %728 = vst [vmem:[#allocation2 + $0xc8] sm:$0xf] %v720
        %729 = vst [vmem:[#allocation2 + $0xd0] sm:$0xf] %v721
        %730 = vst [vmem:[#allocation2 + $0xd8] sm:$0xf] %v722
        %v731 = vld [vmem:[%s184] sm:$0xff]
        %v732 = vld [vmem:[%s184 + $0x8] sm:$0xff]
        %v733 = vld [vmem:[%s184 + $0x10] sm:$0xf]
        %s737 = scalar_lea.vmem [#allocation1], 1
        %738 = vst [vmem:[%s737] ss:$2 sm:$0xff] %v731
        %s739 = scalar_lea.vmem [#allocation1], 17
        %740 = vst [vmem:[%s739] ss:$2 sm:$0xff] %v732
        %s741 = scalar_lea.vmem [#allocation1], 33
        %742 = vst [vmem:[%s741] ss:$2 sm:$0xff] %v733
        %v743 = vld.sshfl [vmem:[#allocation1] sm:$0xff pattern:$0x75316420]
        %v744 = vld.sshfl [vmem:[#allocation1 + $0x8] sm:$0xff pattern:$0x75316420]
        %v745 = vld.sshfl [vmem:[#allocation1 + $0x10] sm:$0xff pattern:$0x75316420]
        %v746 = vld.sshfl [vmem:[#allocation1 + $0x18] sm:$0xff pattern:$0x75316420]
        %v747 = vld.sshfl [vmem:[#allocation1 + $0x20] sm:$0xff pattern:$0x75316420]
        %748 = vrot.lane.b32.xlu0 %v743, 29
        %v749 = vpop.permute.xlu0 %748
        %750 = vrot.lane.b32.xlu0 %v744, 29
        %v751 = vpop.permute.xlu0 %750
        %752 = vrot.lane.b32.xlu0 %v745, 29
        %v753 = vpop.permute.xlu0 %752
        %754 = vrot.lane.b32.xlu0 %v746, 29
        %v755 = vpop.permute.xlu0 %754
        %756 = vrot.lane.b32.xlu0 %v747, 29
        %v757 = vpop.permute.xlu0 %756
        %vm758 = vcmask 236544
        %v759 = vsel %vm758, %v749, %v751
        %v760 = vsel %vm758, %v751, %v753
        %v761 = vsel %vm758, %v753, %v755
        %v762 = vsel %vm758, %v755, %v757
        %767 = vst [vmem:[#allocation2 + $0xc0] sm:$0xf0] %v759
        %768 = vst [vmem:[#allocation2 + $0xc8] sm:$0xf0] %v760
        %769 = vst [vmem:[#allocation2 + $0xd0] sm:$0xf0] %v761
        %770 = vst [vmem:[#allocation2 + $0xd8] sm:$0xf0] %v762
        %v771 = vld [vmem:[%s184] sm:$0xff]
        %v772 = vld [vmem:[%s184 + $0x8] sm:$0xff]
        %v773 = vld [vmem:[%s184 + $0x10] sm:$0xf]
        %777 = vst [vmem:[#allocation1] ss:$2 sm:$0xff] %v771
        %s778 = scalar_lea.vmem [#allocation1], 16
        %779 = vst [vmem:[%s778] ss:$2 sm:$0xff] %v772
        %s780 = scalar_lea.vmem [#allocation1], 32
        %781 = vst [vmem:[%s780] ss:$2 sm:$0xff] %v773
        %v782 = vld.sshfl [vmem:[#allocation1] sm:$0xff pattern:$0x75316420]
        %v783 = vld.sshfl [vmem:[#allocation1 + $0x8] sm:$0xff pattern:$0x75316420]
        %v784 = vld.sshfl [vmem:[#allocation1 + $0x10] sm:$0xff pattern:$0x75316420]
        %v785 = vld.sshfl [vmem:[#allocation1 + $0x18] sm:$0xff pattern:$0x75316420]
        %v786 = vld.sshfl [vmem:[#allocation1 + $0x20] sm:$0xff pattern:$0x75316420]
        %787 = vrot.lane.b32.xlu0 %v782, 62
        %v788 = vpop.permute.xlu0 %787
        %789 = vrot.lane.b32.xlu0 %v783, 62
        %v790 = vpop.permute.xlu0 %789
        %791 = vrot.lane.b32.xlu0 %v784, 62
        %v792 = vpop.permute.xlu0 %791
        %793 = vrot.lane.b32.xlu0 %v785, 62
        %v794 = vpop.permute.xlu0 %793
        %795 = vrot.lane.b32.xlu0 %v786, 62
        %v796 = vpop.permute.xlu0 %795
        %vm797 = vcmask 506880
        %v798 = vsel %vm797, %v788, %v790
        %v799 = vsel %vm797, %v790, %v792
        %v800 = vsel %vm797, %v792, %v794
        %v801 = vsel %vm797, %v794, %v796
        %806 = vst [vmem:[#allocation2 + $0xe0] sm:$0xf] %v798
        %807 = vst [vmem:[#allocation2 + $0xe8] sm:$0xf] %v799
        %808 = vst [vmem:[#allocation2 + $0xf0] sm:$0xf] %v800
        %809 = vst [vmem:[#allocation2 + $0xf8] sm:$0xf] %v801
        %v810 = vld [vmem:[%s184] sm:$0xff]
        %v811 = vld [vmem:[%s184 + $0x8] sm:$0xff]
        %v812 = vld [vmem:[%s184 + $0x10] sm:$0xf]
        %s816 = scalar_lea.vmem [#allocation1], 1
        %817 = vst [vmem:[%s816] ss:$2 sm:$0xff] %v810
        %s818 = scalar_lea.vmem [#allocation1], 17
        %819 = vst [vmem:[%s818] ss:$2 sm:$0xff] %v811
        %s820 = scalar_lea.vmem [#allocation1], 33
        %821 = vst [vmem:[%s820] ss:$2 sm:$0xff] %v812
        %v822 = vld.sshfl [vmem:[#allocation1] sm:$0xff pattern:$0x75316420]
        %v823 = vld.sshfl [vmem:[#allocation1 + $0x8] sm:$0xff pattern:$0x75316420]
        %v824 = vld.sshfl [vmem:[#allocation1 + $0x10] sm:$0xff pattern:$0x75316420]
        %v825 = vld.sshfl [vmem:[#allocation1 + $0x18] sm:$0xff pattern:$0x75316420]
        %v826 = vld.sshfl [vmem:[#allocation1 + $0x20] sm:$0xff pattern:$0x75316420]
        %827 = vrot.lane.b32.xlu0 %v822, 95
        %v828 = vpop.permute.xlu0 %827
        %829 = vrot.lane.b32.xlu0 %v823, 95
        %v830 = vpop.permute.xlu0 %829
        %831 = vrot.lane.b32.xlu0 %v824, 95
        %v832 = vpop.permute.xlu0 %831
        %833 = vrot.lane.b32.xlu0 %v825, 95
        %v834 = vpop.permute.xlu0 %833
        %835 = vrot.lane.b32.xlu0 %v826, 95
        %v836 = vpop.permute.xlu0 %835
        %vm837 = vcmask 777216
        %v838 = vsel %vm837, %v828, %v830
        %v839 = vsel %vm837, %v830, %v832
        %v840 = vsel %vm837, %v832, %v834
        %v841 = vsel %vm837, %v834, %v836
        %846 = vst [vmem:[#allocation2 + $0xe0] sm:$0xf0] %v838
        %847 = vst [vmem:[#allocation2 + $0xe8] sm:$0xf0] %v839
        %848 = vst [vmem:[#allocation2 + $0xf0] sm:$0xf0] %v840
        %849 = vst [vmem:[#allocation2 + $0xf8] sm:$0xf0] %v841
        %v850 = vld [vmem:[%s184] sm:$0xff]
        %v851 = vld [vmem:[%s184 + $0x8] sm:$0xff]
        %854 = vst [vmem:[#allocation1] ss:$2 sm:$0xff] %v850
        %s855 = scalar_lea.vmem [#allocation1], 16
        %856 = vst [vmem:[%s855] ss:$2 sm:$0xff] %v851
        %v857 = vld.sshfl [vmem:[#allocation1] sm:$0xff pattern:$0x75316420]
        %v858 = vld.sshfl [vmem:[#allocation1 + $0x8] sm:$0xff pattern:$0x75316420]
        %v859 = vld.sshfl [vmem:[#allocation1 + $0x10] sm:$0xff pattern:$0x75316420]
        %v860 = vld.sshfl [vmem:[#allocation1 + $0x18] sm:$0xff pattern:$0x75316420]
        %865 = vst [vmem:[#allocation2 + $0x100] sm:$0xf] %v857
        %866 = vst [vmem:[#allocation2 + $0x108] sm:$0xf] %v858
        %867 = vst [vmem:[#allocation2 + $0x110] sm:$0xf] %v859
        %868 = vst [vmem:[#allocation2 + $0x118] sm:$0xf] %v860
        %v869 = vld [vmem:[#allocation6] sm:$0xff]
        %v870 = vld [vmem:[#allocation2] sm:$0xff]
        %v871 = vld [vmem:[#allocation2 + $0x8] sm:$0xff]
        %v872 = vld [vmem:[#allocation2 + $0x10] sm:$0xff]
        %v873 = vld [vmem:[#allocation2 + $0x18] sm:$0xff]
        %v874 = vld [vmem:[#allocation2 + $0x20] sm:$0xff]
        %v875 = vld [vmem:[#allocation2 + $0x28] sm:$0xff]
        %v876 = vld [vmem:[#allocation2 + $0x30] sm:$0xff]
        %v877 = vld [vmem:[#allocation2 + $0x38] sm:$0xff]
        %v878 = vld [vmem:[#allocation2 + $0x40] sm:$0xff]
        %v879 = vld [vmem:[#allocation2 + $0x48] sm:$0xff]
        %v880 = vld [vmem:[#allocation2 + $0x50] sm:$0xff]
        %v881 = vld [vmem:[#allocation2 + $0x58] sm:$0xff]
        %v882 = vld [vmem:[#allocation2 + $0x60] sm:$0xff]
        %v883 = vld [vmem:[#allocation2 + $0x68] sm:$0xff]
        %v884 = vld [vmem:[#allocation2 + $0x70] sm:$0xff]
        %v885 = vld [vmem:[#allocation2 + $0x78] sm:$0xff]
        %v886 = vld [vmem:[#allocation2 + $0x80] sm:$0xff]
        %v887 = vld [vmem:[#allocation2 + $0x88] sm:$0xff]
        %v888 = vld [vmem:[#allocation2 + $0x90] sm:$0xff]
        %v889 = vld [vmem:[#allocation2 + $0x98] sm:$0xff]
        %v890 = vld [vmem:[#allocation2 + $0xa0] sm:$0xff]
        %v891 = vld [vmem:[#allocation2 + $0xa8] sm:$0xff]
        %v892 = vld [vmem:[#allocation2 + $0xb0] sm:$0xff]
        %v893 = vld [vmem:[#allocation2 + $0xb8] sm:$0xff]
        %v894 = vld [vmem:[#allocation2 + $0xc0] sm:$0xff]
        %v895 = vld [vmem:[#allocation2 + $0xc8] sm:$0xff]
        %v896 = vld [vmem:[#allocation2 + $0xd0] sm:$0xff]
        %v897 = vld [vmem:[#allocation2 + $0xd8] sm:$0xff]
        %v898 = vld [vmem:[#allocation2 + $0xe0] sm:$0xff]
        %v899 = vld [vmem:[#allocation2 + $0xe8] sm:$0xff]
        %v900 = vld [vmem:[#allocation2 + $0xf0] sm:$0xff]
        %v901 = vld [vmem:[#allocation2 + $0xf8] sm:$0xff]
        %v902 = vld [vmem:[#allocation2 + $0x100] sm:$0xf]
        %v903 = vld [vmem:[#allocation2 + $0x108] sm:$0xf]
        %v904 = vld [vmem:[#allocation2 + $0x110] sm:$0xf]
        %v905 = vld [vmem:[#allocation2 + $0x118] sm:$0xf]
        %v906 = vld [vmem:[#allocation8] sm:$0xff]
        %v907 = vld [vmem:[#allocation8 + $0x8] sm:$0xff]
        %v908 = vld [vmem:[#allocation8 + $0x10] sm:$0xff]
        %v909 = vld [vmem:[#allocation8 + $0x18] sm:$0xff]
        %vm910 = vcmask 556032
        %v912 = vsel %vm910, %v869, 0
        %vm914 = vcmask 1043456
        %v916 = vsel %vm914, %v902, 0
        %v919 = vsel %vm914, %v903, 0
        %v922 = vsel %vm914, %v904, 0
        %v925 = vsel %vm914, %v905, 0
        %927 = vmatpush.msra.mxu0 0.0
        %928 = vmatpush.msra.mxu0 0.0
        %929 = vmatpush.msra.mxu0 0.0
        %930 = vmatpush.msra.mxu0 0.0
        %931 = vmatpush.msra.mxu0 0.0
        %932 = vmatpush.msra.mxu0 0.0
        %933 = vmatpush.msra.mxu0 0.0
        %934 = vmatpush.msra.mxu0 %v916
        %935 = vmatpush.msra.mxu0 %v898
        %936 = vmatpush.msra.mxu0 %v894
        %937 = vmatpush.msra.mxu0 %v890
        %938 = vmatpush.msra.mxu0 %v886
        %939 = vmatpush.msra.mxu0 %v882
        %940 = vmatpush.msra.mxu0 %v878
        %941 = vmatpush.msra.mxu0 %v874
        %942 = vmatpush.msra.mxu0 %v870
        %943 = vmatmul.f32.gmra.mxu0 %v912
        %v944 = vpop.f32.mrf.mxu0
        %v945 = vadd.f32 %v906, %v944
        %946 = vdwg.mxu0
        %947 = vmatpush.msra.mxu0 0.0
        %948 = vmatpush.msra.mxu0 0.0
        %949 = vmatpush.msra.mxu0 0.0
        %950 = vmatpush.msra.mxu0 0.0
        %951 = vmatpush.msra.mxu0 0.0
        %952 = vmatpush.msra.mxu0 0.0
        %953 = vmatpush.msra.mxu0 0.0
        %954 = vmatpush.msra.mxu0 %v919
        %955 = vmatpush.msra.mxu0 %v899
        %956 = vmatpush.msra.mxu0 %v895
        %957 = vmatpush.msra.mxu0 %v891
        %958 = vmatpush.msra.mxu0 %v887
        %959 = vmatpush.msra.mxu0 %v883
        %960 = vmatpush.msra.mxu0 %v879
        %961 = vmatpush.msra.mxu0 %v875
        %962 = vmatpush.msra.mxu0 %v871
        %963 = vmatmul.f32.gmra.mxu0 %v912
        %v964 = vpop.f32.mrf.mxu0
        %v965 = vadd.f32 %v907, %v964
        %966 = vdwg.mxu0
        %967 = vmatpush.msra.mxu0 0.0
        %968 = vmatpush.msra.mxu0 0.0
        %969 = vmatpush.msra.mxu0 0.0
        %970 = vmatpush.msra.mxu0 0.0
        %971 = vmatpush.msra.mxu0 0.0
        %972 = vmatpush.msra.mxu0 0.0
        %973 = vmatpush.msra.mxu0 0.0
        %974 = vmatpush.msra.mxu0 %v922
        %975 = vmatpush.msra.mxu0 %v900
        %976 = vmatpush.msra.mxu0 %v896
        %977 = vmatpush.msra.mxu0 %v892
        %978 = vmatpush.msra.mxu0 %v888
        %979 = vmatpush.msra.mxu0 %v884
        %980 = vmatpush.msra.mxu0 %v880
        %981 = vmatpush.msra.mxu0 %v876
        %982 = vmatpush.msra.mxu0 %v872
        %983 = vmatmul.f32.gmra.mxu0 %v912
        %v984 = vpop.f32.mrf.mxu0
        %v985 = vadd.f32 %v908, %v984
        %986 = vdwg.mxu0
        %987 = vmatpush.msra.mxu0 0.0
        %988 = vmatpush.msra.mxu0 0.0
        %989 = vmatpush.msra.mxu0 0.0
        %990 = vmatpush.msra.mxu0 0.0
        %991 = vmatpush.msra.mxu0 0.0
        %992 = vmatpush.msra.mxu0 0.0
        %993 = vmatpush.msra.mxu0 0.0
        %994 = vmatpush.msra.mxu0 %v925
        %995 = vmatpush.msra.mxu0 %v901
        %996 = vmatpush.msra.mxu0 %v897
        %997 = vmatpush.msra.mxu0 %v893
        %998 = vmatpush.msra.mxu0 %v889
        %999 = vmatpush.msra.mxu0 %v885
        %1000 = vmatpush.msra.mxu0 %v881
        %1001 = vmatpush.msra.mxu0 %v877
        %1002 = vmatpush.msra.mxu0 %v873
        %1003 = vmatmul.f32.gmra.mxu0 %v912
        %v1004 = vpop.f32.mrf.mxu0
        %v1005 = vadd.f32 %v909, %v1004
        %1006 = vdwg.mxu0
        %1007 = vst [vmem:[%s217] sm:$0xff] %v945
        %1008 = vst [vmem:[%s217 + $0x8] sm:$0xff] %v965
        %1009 = vst [vmem:[%s217 + $0x10] sm:$0xff] %v985
        %1010 = vst [vmem:[%s217 + $0x18] sm:$0xff] %v1005
        %s1011 = sand.u32 %s97, 1
        %s1012 = scalar_lea.sflag [#allocation5], %s1011
        %s1013 = sand.u32 %s97, 1
        %s1014 = smul.addr %s1013, 32
        %s1015 = scalar_lea.vmem [#allocation9], %s1014
        // Predicated region
        $region45: #{tpu_custom_call.1} parent=31 // pred_check
          %p1016 = pneg %p107
        $region46: #{tpu_custom_call.1} parent=31 // pred_check_branch
          %1018 = sbr.rel (%p1016) target = $region48
        $region47: #{tpu_custom_call.1} parent=31 // pred_region
          %1020 = vsyncadd %s1012, 0
          %s1021 = smul.addr %s21, 4
          %s1022 = smul.addr %s1021, 8
          %s1023 = scalar_lea.hbm %s3, %s1022
          %s1025 = sshll.u32 %s1015, 4
          %s1026 = int_to_ptr.vmem [resolvable:$true] %s1025
          %s1027 = sshll.u32 %s1023, 4
          %s1028 = int_to_ptr.hbm [resolvable:$true] %s1027
          %1030 = dma.vmem_to_hbm [thread:$0]  %s1026, 512, %s1028, %s1012
        $region48: #{tpu_custom_call.1} parent=31 // pred_fallthru
          _
      $region32: #{tpu_custom_call.1} parent=5 // pred_fallthru
        _
      %p1031 = scmp.le.s32.totalorder 2, %s16
      // Predicated region
      $region49: #{tpu_custom_call.1} parent=5 // pred_check
        %p1032 = pneg %p1031
      $region50: #{tpu_custom_call.1} parent=5 // pred_check_branch
        %1034 = sbr.rel (%p1032) target = $region52
      $region51: #{tpu_custom_call.1} parent=5 // pred_region
        %s1035 = ssub.s32 %s16, 2
        // Predicated region
        $region53: #{tpu_custom_call.1} parent=51 // pred_check
          %p1036 = pneg %p113
        $region54: #{tpu_custom_call.1} parent=51 // pred_check_branch
          %1038 = sbr.rel (%p1036) target = $region56
        $region55: #{tpu_custom_call.1} parent=51 // pred_region
          %s1039 = sand.u32 %s98, 1
          %s1040 = scalar_lea.sflag [#allocation5], %s1039
          %s1041 = sand.u32 %s98, 1
          %s1042 = smul.addr %s1041, 32
          %s1043 = scalar_lea.vmem [#allocation9], %s1042
          %1045 = dma.done %s1040, 512
        $region56: #{tpu_custom_call.1} parent=51 // pred_fallthru
          _
      $region52: #{tpu_custom_call.1} parent=5 // pred_fallthru
        _
    $region6: #{tpu_custom_call.1} parent=1 // loop_footer
      %s20 = sadd.s32 1, %s16
    $region7: #{tpu_custom_call.1} parent=1 // loop_footer_branch
      %15 = sbr.rel target = $region3
    $region8: #{tpu_custom_call.1} parent=1 // loop_exit
      _
    %1046 = vsyncpa [#allocation4], 1
    %s1047 = scalar_lea.sflag [#allocation4], 1
    %1048 = vsyncpa %s1047, 1
    %1049 = vsyncpa [#allocation7], 1
    %1050 = vsyncpa [#allocation5], 1
    %s1051 = scalar_lea.sflag [#allocation5], 1
    %1052 = vsyncpa %s1051, 1

</llo_original>
